<compile_context>
chip_gen: v6e
topology: v6e:2x2x1
jax: 0.10.0
libtpu: 0.0.40
codegen_flags: <defaults>
</compile_context>

<pallas_src>
import functools

import jax
import jax.numpy as jnp
from jax.experimental import pallas as pl
from jax.experimental.pallas import tpu as pltpu

LANE = 128  # vreg lane width


def _smooth_l1_kernel(p_ref, t_ref, m_ref, loss_ref, msk_ref, *,
                      sigma2, rows, tile_rows, steps, nblocks,
                      needs_row_mask, needs_block_guard):
    """One (tile_rows, LANE) tile: elementwise smooth-L1, masked partial sums.

    Outputs are (1, 1, LANE) lane-dense partial accumulators, one per split of
    the leading "parallel" grid axis; zeroed at the first inner step and
    accumulated across the inner ("arbitrary") axis.
    """
    s = pl.program_id(0)
    i = pl.program_id(1)
    blk = s * steps + i

    @pl.when(i == 0)
    def _():
        loss_ref[...] = jnp.zeros_like(loss_ref)
        msk_ref[...] = jnp.zeros_like(msk_ref)

    def accumulate(mask_rows):
        # Cast after the load: DMA streams the native dtype (f32/bf16 inputs,
        # 1-byte or native-float mask); math stays in f32.
        p = p_ref[...].astype(jnp.float32)
        t = t_ref[...].astype(jnp.float32)
        mf = m_ref[...].astype(jnp.float32)   # 0/1 mask weights
        diff = p - t
        adiff = jnp.abs(diff)
        loss = jnp.where(adiff < (1.0 / sigma2),
                         adiff - 0.5 / sigma2,
                         (0.5 * sigma2) * diff * diff)
        if mask_rows:
            # Only the overhanging last row-block pays for this: zero both the
            # loss (garbage data could be non-finite) and the mask weights for
            # rows past the end of the array.
            rid = blk * tile_rows + jax.lax.broadcasted_iota(
                jnp.int32, (tile_rows, LANE), 0)
            inb = rid < rows
            loss = jnp.where(inb, loss, 0.0)
            mf = jnp.where(inb, mf, 0.0)
        # Multiply-by-mask (mask assumed 0/1) instead of compare+select;
        # sublane-only reduce per step, cross-lane reduce happens once outside.
        loss_ref[0] += jnp.sum(loss * mf, axis=0, keepdims=True)
        msk_ref[0] += jnp.sum(mf, axis=0, keepdims=True)

    in_range = (blk < nblocks) if needs_block_guard else None

    if needs_row_mask:
        is_last = blk == nblocks - 1
        if in_range is None:
            ragged_cond = is_last
            full_cond = jnp.logical_not(is_last)
        else:
            ragged_cond = jnp.logical_and(in_range, is_last)
            full_cond = jnp.logical_and(in_range, jnp.logical_not(is_last))

        @pl.when(ragged_cond)
        def _():
            accumulate(True)

        @pl.when(full_cond)
        def _():
            accumulate(False)
    elif in_range is not None:
        @pl.when(in_range)
        def _():
            accumulate(False)
    else:
        accumulate(False)


def smooth_l1_loss(predict, target, mask, sigma=3, reduce=True,
                   max_tile_rows=None):
    # Inputs are NCHW (B, C, H, W) like the PyTorch module; mask is 0/1 (or
    # bool) with the same shape as predict/target.
    if not reduce:
        # TODO(synk): reduce=False needs a boolean gather (predict[mask]) with
        # a data-dependent output shape + per-row sum; only the default
        # reduce=True path is implemented.
        raise NotImplementedError("reduce=False is not supported")

    sigma2 = float(sigma) * float(sigma)
    c = mask.shape[1]  # mask.size(1) in the PyTorch code

    # Stream the mask at 1 byte: bool -> int8 is a cheap 1B->1B cast.  Float /
    # other masks are streamed at their native dtype and cast in-VMEM.
    if mask.dtype == jnp.bool_:
        mask = mask.astype(jnp.int8)

    p = predict.reshape(-1)
    t = target.reshape(-1)
    m = mask.reshape(-1)
    n = p.shape[0]

    # No jnp.pad (that would re-materialize all three arrays in HBM): run the
    # kernel on the lane-aligned bulk and sum the <128-element tail in plain
    # JAX below.
    rows = n // LANE
    bulk = rows * LANE

    loss_sum = jnp.float32(0.0)
    mask_sum = jnp.float32(0.0)

    if rows > 0:
        p2 = p[:bulk].reshape(rows, LANE)
        t2 = t[:bulk].reshape(rows, LANE)
        m2 = m[:bulk].reshape(rows, LANE)

        # Dtype-aware big row blocks (grid-step overhead is what hurts a
        # mem-bound kernel).  2048 rows f32 / 4096 rows bf16 keeps the
        # double-buffered footprint <= ~8 MiB, well under scoped VMEM on
        # v5e/v6e/v7x.  (If overridden, the value must respect dtype sublane
        # tiling: multiple of 8 for f32, 16 for bf16, 32 for int8 masks.)
        if max_tile_rows is None:
            max_tile_rows = (4096 if max(p2.dtype.itemsize,
                                         t2.dtype.itemsize) <= 2 else 2048)
        tile_rows = rows if rows <= max_tile_rows else max_tile_rows
        nblocks = pl.cdiv(rows, tile_rows)

        # 2-way split over the leading "parallel" axis for any nblocks >= 2 so
        # a 2-TC chip (v7x) can share the streaming; each split owns its own
        # output block (no shared-accumulator race).  Odd block counts clamp
        # the index_map and gate the duplicated step off in-kernel.
        nsplit = 2 if nblocks >= 2 else 1
        steps = pl.cdiv(nblocks, nsplit)
        needs_block_guard = (nsplit * steps) != nblocks
        needs_row_mask = (rows % tile_rows) != 0

        if needs_block_guard:
            in_map = lambda s, i: (jnp.minimum(s * steps + i, nblocks - 1), 0)
        else:
            in_map = lambda s, i: (s * steps + i, 0)
        out_map = lambda s, i: (s, 0, 0)

        kernel = functools.partial(
            _smooth_l1_kernel, sigma2=sigma2, rows=rows, tile_rows=tile_rows,
            steps=steps, nblocks=nblocks, needs_row_mask=needs_row_mask,
            needs_block_guard=needs_block_guard)

        part_loss, part_mask = pl.pallas_call(
            kernel,
            out_shape=(jax.ShapeDtypeStruct((nsplit, 1, LANE), jnp.float32),
                       jax.ShapeDtypeStruct((nsplit, 1, LANE), jnp.float32)),
            grid_spec=pltpu.PrefetchScalarGridSpec(
                num_scalar_prefetch=0,
                grid=(nsplit, steps),
                in_specs=[
                    pl.BlockSpec((tile_rows, LANE), in_map),
                    pl.BlockSpec((tile_rows, LANE), in_map),
                    pl.BlockSpec((tile_rows, LANE), in_map),
                ],
                out_specs=[
                    pl.BlockSpec((1, 1, LANE), out_map),
                    pl.BlockSpec((1, 1, LANE), out_map),
                ],
            ),
            compiler_params=pltpu.CompilerParams(
                dimension_semantics=("parallel", "arbitrary")),
        )(p2, t2, m2)

        # Tiny final cross-lane reduce in plain JAX.
        loss_sum = loss_sum + jnp.sum(part_loss)
        mask_sum = mask_sum + jnp.sum(part_mask)

    if bulk != n:
        # <128-element ragged tail, plain JAX — cheaper than re-padding all of
        # predict/target/mask in HBM just to lane-align them.
        pt = p[bulk:].astype(jnp.float32)
        tt = t[bulk:].astype(jnp.float32)
        mt = m[bulk:].astype(jnp.float32)
        d = pt - tt
        ad = jnp.abs(d)
        lt = jnp.where(ad < (1.0 / sigma2), ad - 0.5 / sigma2,
                       (0.5 * sigma2) * d * d)
        loss_sum = loss_sum + jnp.sum(lt * mt)
        mask_sum = mask_sum + jnp.sum(mt)

    # Matches the PyTorch reference: all-zero mask -> inf/NaN.
    num_object = mask_sum / c
    return loss_sum / num_object


def _reference(predict, target, mask, sigma=3):
    sigma2 = float(sigma) * float(sigma)
    diff = predict.astype(jnp.float32) - target.astype(jnp.float32)
    diff_abs = jnp.abs(diff)
    near = (diff_abs < 1.0 / sigma2).astype(jnp.float32)
    far = 1.0 - near
    loss = far * 0.5 * sigma2 * diff * diff + near * (diff_abs - 0.5 / sigma2)
    m = mask.astype(jnp.float32)
    num_object = jnp.sum(m) / mask.shape[1]
    return jnp.sum(m * loss) / num_object


def _check(out, ref, tag):
    out = float(out)
    ref = float(ref)
    assert abs(out - ref) <= 1e-3 * max(1.0, abs(ref)), (tag, out, ref)


if __name__ == "__main__":
    key = jax.random.PRNGKey(0)
    k1, k2, k3, k4, k5, k6, k7, k8, k9 = jax.random.split(key, 9)

    # 1) Primary small case: f32 inputs, bool mask (streamed as int8),
    #    lane-aligned, single full-array block.
    B, C, H, W = 2, 4, 16, 16
    predict = jax.random.normal(k1, (B, C, H, W), dtype=jnp.float32)
    target = jax.random.normal(k2, (B, C, H, W), dtype=jnp.float32)
    mask = jax.random.uniform(k3, (B, C, H, W)) > 0.5   # bool, like torch indexing

    out = jax.block_until_ready(smooth_l1_loss(predict, target, mask, sigma=3))
    _check(out, _reference(predict, target, mask, sigma=3), "case1")

    # 2) Multi-block path with odd block count (clamped+gated duplicate step),
    #    ragged last row-block, non-lane-aligned tail, native f32 mask.
    B2, C2, H2, W2 = 2, 4, 23, 13
    predict2 = jax.random.normal(k4, (B2, C2, H2, W2), dtype=jnp.float32)
    target2 = jax.random.normal(k5, (B2, C2, H2, W2), dtype=jnp.float32)
    mask2 = (jax.random.uniform(k6, (B2, C2, H2, W2)) > 0.5).astype(jnp.float32)

    out2 = jax.block_until_ready(
        smooth_l1_loss(predict2, target2, mask2, sigma=3, max_tile_rows=8))
    _check(out2, _reference(predict2, target2, mask2, sigma=3), "case2")

    # 3) bf16 inputs cast in-VMEM, bool mask, non-lane-aligned tail,
    #    single full-array block at default tiling.
    B3, C3, H3, W3 = 2, 4, 17, 19
    predict3 = jax.random.normal(k7, (B3, C3, H3, W3), dtype=jnp.bfloat16)
    target3 = jax.random.normal(k8, (B3, C3, H3, W3), dtype=jnp.bfloat16)
    mask3 = jax.random.uniform(k9, (B3, C3, H3, W3)) > 0.5

    out3 = jax.block_until_ready(smooth_l1_loss(predict3, target3, mask3, sigma=3))
    _check(out3, _reference(predict3, target3, mask3, sigma=3), "case3")

    print("KERNEL_OK")
</pallas_src>

<mosaic_0001>
module attributes {stable_mosaic.version = 11 : i64} {
  func.func @_smooth_l1_kernel(%arg0: i32, %arg1: i32, %arg2: memref<16x128xf32, #tpu.memory_space<vmem>>, %arg3: memref<16x128xf32, #tpu.memory_space<vmem>>, %arg4: memref<16x128xi8, #tpu.memory_space<vmem>>, %arg5: memref<1x1x128xf32, #tpu.memory_space<vmem>>, %arg6: memref<1x1x128xf32, #tpu.memory_space<vmem>>) attributes {dimension_semantics = [#tpu.dimension_semantics<parallel>, #tpu.dimension_semantics<arbitrary>], iteration_bounds = array<i64: 1, 1>, scalar_prefetch = 0 : i64, scratch_operands = 0 : i64, tpu.core_type = #tpu.core_type<tc>, window_params = [{transform_indices = @transform_0, window_bounds = array<i64: 16, 128>}, {transform_indices = @transform_1, window_bounds = array<i64: 16, 128>}, {transform_indices = @transform_2, window_bounds = array<i64: 16, 128>}, {transform_indices = @transform_3, window_bounds = array<i64: 1, 1, 128>}, {transform_indices = @transform_4, window_bounds = array<i64: 1, 1, 128>}]} {
    %c0_i32 = arith.constant 0 : i32
    %0 = arith.cmpi eq, %arg1, %c0_i32 : i32
    %1 = arith.extui %0 : i1 to i32
    %c0_i32_0 = arith.constant 0 : i32
    %2 = arith.cmpi ne, %1, %c0_i32_0 : i32
    scf.if %2 {
      %cst_22 = arith.constant 0.000000e+00 : f32
      %34 = vector.broadcast %cst_22 : f32 to vector<1x1x128xf32>
      %c0_23 = arith.constant 0 : index
      %c0_24 = arith.constant 0 : index
      %c0_25 = arith.constant 0 : index
      %35 = vector.load %arg5[%c0_23, %c0_24, %c0_25] : memref<1x1x128xf32, #tpu.memory_space<vmem>>, vector<1x1x128xf32>
      tpu.vector_store %arg5[%c0_23, %c0_24, %c0_25], %34 {strides = array<i32>} : memref<1x1x128xf32, #tpu.memory_space<vmem>>, vector<1x1x128xf32>,
      %cst_26 = arith.constant 0.000000e+00 : f32
      %36 = vector.broadcast %cst_26 : f32 to vector<1x1x128xf32>
      %c0_27 = arith.constant 0 : index
      %c0_28 = arith.constant 0 : index
      %c0_29 = arith.constant 0 : index
      %37 = vector.load %arg6[%c0_27, %c0_28, %c0_29] : memref<1x1x128xf32, #tpu.memory_space<vmem>>, vector<1x1x128xf32>
      tpu.vector_store %arg6[%c0_27, %c0_28, %c0_29], %36 {strides = array<i32>} : memref<1x1x128xf32, #tpu.memory_space<vmem>>, vector<1x1x128xf32>,
    } else {
    }
    %c0 = arith.constant 0 : index
    %c0_1 = arith.constant 0 : index
    %3 = vector.load %arg2[%c0, %c0_1] : memref<16x128xf32, #tpu.memory_space<vmem>>, vector<16x128xf32>
    %c0_2 = arith.constant 0 : index
    %c0_3 = arith.constant 0 : index
    %4 = vector.load %arg3[%c0_2, %c0_3] : memref<16x128xf32, #tpu.memory_space<vmem>>, vector<16x128xf32>
    %c0_4 = arith.constant 0 : index
    %c0_5 = arith.constant 0 : index
    %5 = vector.load %arg4[%c0_4, %c0_5] : memref<16x128xi8, #tpu.memory_space<vmem>>, vector<16x128xi8>
    %6 = arith.sitofp %5 : vector<16x128xi8> to vector<16x128xf32>
    %7 = arith.subf %3, %4 : vector<16x128xf32>
    %8 = math.absf %7 : vector<16x128xf32>
    %cst = arith.constant 0.111111112 : f32
    %9 = vector.broadcast %cst : f32 to vector<16x128xf32>
    %10 = arith.cmpf olt, %8, %9 : vector<16x128xf32>
    %cst_6 = arith.constant 0.055555556 : f32
    %11 = vector.broadcast %cst_6 : f32 to vector<16x128xf32>
    %12 = arith.subf %8, %11 : vector<16x128xf32>
    %cst_7 = arith.constant 4.500000e+00 : f32
    %13 = vector.broadcast %cst_7 : f32 to vector<16x128xf32>
    %14 = arith.mulf %13, %7 : vector<16x128xf32>
    %15 = arith.mulf %14, %7 : vector<16x128xf32>
    %16 = arith.select %10, %12, %15 : vector<16x128xi1>, vector<16x128xf32>
    %c0_8 = arith.constant 0 : index
    %c0_9 = arith.constant 0 : index
    %c0_10 = arith.constant 0 : index
    %17 = vector.load %arg5[%c0_8, %c0_9, %c0_10] : memref<1x1x128xf32, #tpu.memory_space<vmem>>, vector<1x1x128xf32>
    %18 = vector.shape_cast %17 : vector<1x1x128xf32> to vector<1x128xf32>
    %19 = arith.mulf %16, %6 : vector<16x128xf32>
    %cst_11 = arith.constant dense<0.000000e+00> : vector<128xf32>
    %20 = vector.multi_reduction <add>, %19, %cst_11 [0] : vector<16x128xf32> to vector<128xf32>
    %21 = vector.shape_cast %20 : vector<128xf32> to vector<1x128xf32>
    %22 = arith.addf %18, %21 : vector<1x128xf32>
    %c0_12 = arith.constant 0 : index
    %c0_13 = arith.constant 0 : index
    %c0_14 = arith.constant 0 : index
    %23 = vector.load %arg5[%c0_12, %c0_13, %c0_14] : memref<1x1x128xf32, #tpu.memory_space<vmem>>, vector<1x1x128xf32>
    %24 = vector.shape_cast %23 : vector<1x1x128xf32> to vector<1x128xf32>
    %25 = vector.shape_cast %22 : vector<1x128xf32> to vector<1x1x128xf32>
    tpu.vector_store %arg5[%c0_12, %c0_13, %c0_14], %25 {strides = array<i32>} : memref<1x1x128xf32, #tpu.memory_space<vmem>>, vector<1x1x128xf32>,
    %c0_15 = arith.constant 0 : index
    %c0_16 = arith.constant 0 : index
    %c0_17 = arith.constant 0 : index
    %26 = vector.load %arg6[%c0_15, %c0_16, %c0_17] : memref<1x1x128xf32, #tpu.memory_space<vmem>>, vector<1x1x128xf32>
    %27 = vector.shape_cast %26 : vector<1x1x128xf32> to vector<1x128xf32>
    %cst_18 = arith.constant dense<0.000000e+00> : vector<128xf32>
    %28 = vector.multi_reduction <add>, %6, %cst_18 [0] : vector<16x128xf32> to vector<128xf32>
    %29 = vector.shape_cast %28 : vector<128xf32> to vector<1x128xf32>
    %30 = arith.addf %27, %29 : vector<1x128xf32>
    %c0_19 = arith.constant 0 : index
    %c0_20 = arith.constant 0 : index
    %c0_21 = arith.constant 0 : index
    %31 = vector.load %arg6[%c0_19, %c0_20, %c0_21] : memref<1x1x128xf32, #tpu.memory_space<vmem>>, vector<1x1x128xf32>
    %32 = vector.shape_cast %31 : vector<1x1x128xf32> to vector<1x128xf32>
    %33 = vector.shape_cast %30 : vector<1x128xf32> to vector<1x1x128xf32>
    tpu.vector_store %arg6[%c0_19, %c0_20, %c0_21], %33 {strides = array<i32>} : memref<1x1x128xf32, #tpu.memory_space<vmem>>, vector<1x1x128xf32>,
    return
  }
  func.func @transform_0(%arg0: i32, %arg1: i32) -> (i32, i32) {
    %c1_i32 = arith.constant 1 : i32
    %0 = arith.muli %arg0, %c1_i32 : i32
    %1 = arith.addi %0, %arg1 : i32
    %c0_i32 = arith.constant 0 : i32
    %c0_i32_0 = arith.constant 0 : i32
    return %1, %c0_i32 : i32, i32
  }
  func.func @transform_1(%arg0: i32, %arg1: i32) -> (i32, i32) {
    %c1_i32 = arith.constant 1 : i32
    %0 = arith.muli %arg0, %c1_i32 : i32
    %1 = arith.addi %0, %arg1 : i32
    %c0_i32 = arith.constant 0 : i32
    %c0_i32_0 = arith.constant 0 : i32
    return %1, %c0_i32 : i32, i32
  }
  func.func @transform_2(%arg0: i32, %arg1: i32) -> (i32, i32) {
    %c1_i32 = arith.constant 1 : i32
    %0 = arith.muli %arg0, %c1_i32 : i32
    %1 = arith.addi %0, %arg1 : i32
    %c0_i32 = arith.constant 0 : i32
    %c0_i32_0 = arith.constant 0 : i32
    return %1, %c0_i32 : i32, i32
  }
  func.func @transform_3(%arg0: i32, %arg1: i32) -> (i32, i32, i32) {
    %c0_i32 = arith.constant 0 : i32
    %c0_i32_0 = arith.constant 0 : i32
    %c0_i32_1 = arith.constant 0 : i32
    return %arg0, %c0_i32, %c0_i32_0 : i32, i32, i32
  }
  func.func @transform_4(%arg0: i32, %arg1: i32) -> (i32, i32, i32) {
    %c0_i32 = arith.constant 0 : i32
    %c0_i32_0 = arith.constant 0 : i32
    %c0_i32_1 = arith.constant 0 : i32
    return %arg0, %c0_i32, %c0_i32_0 : i32, i32, i32
  }
}

</mosaic_0001>

<llo_original>
// kernel: tpu_custom_call.1
$region0: #{tpu_custom_call.1}
  #allocation0 [shape = 'u32[]', space=smem, size = 0x4, offset = 0x4, fixed_abs, tag = 'smem constant byte address 0x4 - core index']
  #allocation1 [shape = 'u32[144,128]{1,0:T(1,128)}', space=vmem, size = 0x12000, scoped, tag = 'internal scratch']
  %s0 = inlined_call_operand.hbm [shape: f32[16,128], index: 0, kind: input, shape index: {}]
  %s1 = inlined_call_operand.hbm [shape: f32[16,128], index: 1, kind: input, shape index: {}]
  %s2 = inlined_call_operand.hbm [shape: s8[16,128], index: 2, kind: input, shape index: {}]
  %s3 = inlined_call_operand.hbm [shape: f32[1,1,128], index: 3, kind: output, shape index: {0}]
  %s4 = inlined_call_operand.hbm [shape: f32[1,1,128], index: 4, kind: output, shape index: {1}]
  %5 = xla_tuple %s3, %s4
  %s6 = sld [smem:[#allocation0]]
  $region46: #{tpu_custom_call.1} parent=0
    _
  %s8 = ssub.s32 1, %s6
  %s9 = scalar_select 0, %s8, %s6
  $region1: #{tpu_custom_call.1} parent=0
    #allocation2 [shape = 'u8[8192]{0}', space=vmem, size = 0x2000, scoped, tag = 'input window, operand 0, single buffered']
    #allocation3 [shape = 's32[1]{0}', space=sflag, size = 0x4, scoped, tag = 'scoped memory for tpu_custom_call.1']
    #allocation4 [shape = 's32[1]{0}', space=sflag, size = 0x4, scoped, tag = 'scoped memory for tpu_custom_call.1']
    #allocation5 [shape = 'u8[8192]{0}', space=vmem, size = 0x2000, scoped, tag = 'input window, operand 1, single buffered']
    #allocation6 [shape = 's32[1]{0}', space=sflag, size = 0x4, scoped, tag = 'scoped memory for tpu_custom_call.1']
    #allocation7 [shape = 'u8[2048]{0}', space=vmem, size = 0x800, scoped, tag = 'input window, operand 2, single buffered']
    #allocation8 [shape = 'u8[512]{0}', space=vmem, size = 0x400, scoped, tag = 'output window, operand 0, single buffered']
    #allocation9 [shape = 'u8[512]{0}', space=vmem, size = 0x400, scoped, tag = 'output window, operand 1, single buffered']
    #allocation10 [shape = 's32[1]{0}', space=sflag, size = 0x4, scoped, tag = 'scoped memory for tpu_custom_call.1']
    %10 = vsyncpa [#allocation3], 0
    %11 = vsyncpa [#allocation6], 0
    %12 = vsyncpa [#allocation4], 0
    %13 = vsyncpa [#allocation10], 0
    // Predicated region
    $region2: #{tpu_custom_call.1} parent=1 // pred_check
      _
    $region3: #{tpu_custom_call.1} parent=1 // pred_check_branch
      %15 = sbr.rel (0) target = $region5
    $region4: #{tpu_custom_call.1} parent=1 // pred_region
      %s16 = sadd.s32 0, 0
      %s17 = smul.u32 2, %s16
      %s19 = ssub.s32 256, 256
      %20 = vsyncadd [#allocation3], %s19
      %s21 = smul.addr %s17, 128
      %s22 = scalar_lea.hbm %s0, %s21
      %s23 = sshll.u32 [#allocation2], 4
      %s24 = int_to_ptr.vmem [resolvable:$true] %s23
      %29 = dma.hbm_to_vmem [thread:$0]  %s22, 256, %s24, [#allocation3], 128, 128, 8
    $region5: #{tpu_custom_call.1} parent=1 // pred_fallthru
      _
    // Predicated region
    $region6: #{tpu_custom_call.1} parent=1 // pred_check
      _
    $region7: #{tpu_custom_call.1} parent=1 // pred_check_branch
      %31 = sbr.rel (0) target = $region9
    $region8: #{tpu_custom_call.1} parent=1 // pred_region
      %s32 = sadd.s32 0, 0
      %s33 = smul.u32 2, %s32
      %s35 = ssub.s32 256, 256
      %36 = vsyncadd [#allocation6], %s35
      %s37 = smul.addr %s33, 128
      %s38 = scalar_lea.hbm %s1, %s37
      %s39 = sshll.u32 [#allocation5], 4
      %s40 = int_to_ptr.vmem [resolvable:$true] %s39
      %45 = dma.hbm_to_vmem [thread:$0]  %s38, 256, %s40, [#allocation6], 128, 128, 8
    $region9: #{tpu_custom_call.1} parent=1 // pred_fallthru
      _
    // Predicated region
    $region10: #{tpu_custom_call.1} parent=1 // pred_check
      _
    $region11: #{tpu_custom_call.1} parent=1 // pred_check_branch
      %47 = sbr.rel (0) target = $region13
    $region12: #{tpu_custom_call.1} parent=1 // pred_region
      %s48 = sadd.s32 0, 0
      %s49 = smul.u32 2, %s48
      %s51 = ssub.s32 64, 64
      %52 = vsyncadd [#allocation6], %s51
      %s53 = smul.addr %s49, 32
      %s54 = scalar_lea.hbm %s2, %s53
      %s55 = sshll.u32 [#allocation7], 4
      %s56 = int_to_ptr.vmem [resolvable:$true] %s55
      %61 = dma.hbm_to_vmem [thread:$0]  %s54, 64, %s56, [#allocation6], 32, 32, 2
    $region13: #{tpu_custom_call.1} parent=1 // pred_fallthru
      _
    // Predicated region
    $region14: #{tpu_custom_call.1} parent=1 // pred_check
      _
    $region15: #{tpu_custom_call.1} parent=1 // pred_check_branch
      %63 = sbr.rel (0) target = $region17
    $region16: #{tpu_custom_call.1} parent=1 // pred_region
      %64 = dma.done [#allocation3], 256
    $region17: #{tpu_custom_call.1} parent=1 // pred_fallthru
      _
    // Predicated region
    $region18: #{tpu_custom_call.1} parent=1 // pred_check
      _
    $region19: #{tpu_custom_call.1} parent=1 // pred_check_branch
      %66 = sbr.rel (0) target = $region21
    $region20: #{tpu_custom_call.1} parent=1 // pred_region
      %67 = dma.done [#allocation6], 256
    $region21: #{tpu_custom_call.1} parent=1 // pred_fallthru
      _
    // Predicated region
    $region22: #{tpu_custom_call.1} parent=1 // pred_check
      _
    $region23: #{tpu_custom_call.1} parent=1 // pred_check_branch
      %69 = sbr.rel (0) target = $region25
    $region24: #{tpu_custom_call.1} parent=1 // pred_region
      %70 = dma.done [#allocation6], 64
    $region25: #{tpu_custom_call.1} parent=1 // pred_fallthru
      _
    %s71 = sadd.s32 0, 0
    %s72 = smul.u32 2, %s71
    %s73 = sadd.s32 0, 0
    %s74 = smul.u32 2, %s73
    %s75 = sadd.s32 0, 0
    %s76 = smul.u32 2, %s75
    %p77 = scmp.eq.s32.totalorder 0, 0
    // Predicated region
    $region26: #{tpu_custom_call.1} parent=1 // pred_check
      %p78 = pneg %p77
    $region27: #{tpu_custom_call.1} parent=1 // pred_check_branch
      %80 = sbr.rel (%p78) target = $region29
    $region28: #{tpu_custom_call.1} parent=1 // pred_region
      %81 = vst [vmem:[#allocation8] sm:$0x1] 0.0
      %82 = vst [vmem:[#allocation9] sm:$0x1] 0.0
    $region29: #{tpu_custom_call.1} parent=1 // pred_fallthru
      _
    %v83 = vld [vmem:[#allocation2] sm:$0xff]
    %v84 = vld [vmem:[#allocation2 + $0x8] sm:$0xff]
    %v85 = vld [vmem:[#allocation5] sm:$0xff]
    %v86 = vld [vmem:[#allocation5 + $0x8] sm:$0xff]
    %v87 = vld [vmem:[#allocation7] sm:$0x3]
    %v88 = vld [vmem:[#allocation7 + $0x2] sm:$0x3]
    %v89 = vunpack.c.0.s8 %v87
    %v90 = vunpack.c.0.s8 %v88
    %v91 = vcvt.s32.f32 %v89
    %v92 = vcvt.s32.f32 %v90
    %v93 = vsub.f32 %v83, %v85
    %v94 = vsub.f32 %v84, %v86
    %v95 = vand.u32 2147483647, %v93
    %v96 = vand.u32 2147483647, %v94
    %vm97 = vcmp.lt.f32.partialorder %v95, 0.11111111
    %vm98 = vcmp.lt.f32.partialorder %v96, 0.11111111
    %v99 = vsub.f32 %v95, 0.055555556
    %v100 = vsub.f32 %v96, 0.055555556
    %v101 = vmul.f32 %v93, 4.5
    %v102 = vmul.f32 %v94, 4.5
    %v103 = vmul.f32 %v101, %v93
    %v104 = vmul.f32 %v102, %v94
    %v105 = vsel %vm97, %v99, %v103
    %v106 = vsel %vm98, %v100, %v104
    %v107 = vld [vmem:[#allocation8] sm:$0x1]
    %v108 = vmul.f32 %v105, %v91
    %v109 = vmul.f32 %v106, %v92
    %v110 = vadd.f32 %v108, %v109
    %v111 = vrot.slane %v110, 4
    %v112 = vadd.f32 %v110, %v111
    %v113 = vrot.slane %v112, 2
    %v114 = vadd.f32 %v112, %v113
    %v115 = vrot.slane %v114, 1
    %v116 = vadd.f32 %v114, %v115
    %v117 = vadd.f32 %v107, %v116
    %118 = vst [vmem:[#allocation8] sm:$0x1] %v117
    %v119 = vld [vmem:[#allocation9] sm:$0x1]
    %v120 = vadd.f32 %v91, %v92
    %v121 = vrot.slane %v120, 4
    %v122 = vadd.f32 %v120, %v121
    %v123 = vrot.slane %v122, 2
    %v124 = vadd.f32 %v122, %v123
    %v125 = vrot.slane %v124, 1
    %v126 = vadd.f32 %v124, %v125
    %v127 = vadd.f32 %v119, %v126
    %128 = vst [vmem:[#allocation9] sm:$0x1] %v127
    // Predicated region
    $region30: #{tpu_custom_call.1} parent=1 // pred_check
      _
    $region31: #{tpu_custom_call.1} parent=1 // pred_check_branch
      %130 = sbr.rel (0) target = $region33
    $region32: #{tpu_custom_call.1} parent=1 // pred_region
      %s132 = ssub.s32 16, 16
      %133 = vsyncadd [#allocation4], %s132
      %s135 = sshll.u32 [#allocation8], 4
      %s136 = int_to_ptr.vmem [resolvable:$true] %s135
      %138 = dma.vmem_to_hbm [thread:$0]  %s136, 16, %s3, [#allocation4]
    $region33: #{tpu_custom_call.1} parent=1 // pred_fallthru
      _
    // Predicated region
    $region34: #{tpu_custom_call.1} parent=1 // pred_check
      _
    $region35: #{tpu_custom_call.1} parent=1 // pred_check_branch
      %140 = sbr.rel (0) target = $region37
    $region36: #{tpu_custom_call.1} parent=1 // pred_region
      %s142 = ssub.s32 16, 16
      %143 = vsyncadd [#allocation10], %s142
      %s145 = sshll.u32 [#allocation9], 4
      %s146 = int_to_ptr.vmem [resolvable:$true] %s145
      %148 = dma.vmem_to_hbm [thread:$0]  %s146, 16, %s4, [#allocation10]
    $region37: #{tpu_custom_call.1} parent=1 // pred_fallthru
      _
    // Predicated region
    $region38: #{tpu_custom_call.1} parent=1 // pred_check
      _
    $region39: #{tpu_custom_call.1} parent=1 // pred_check_branch
      %150 = sbr.rel (0) target = $region41
    $region40: #{tpu_custom_call.1} parent=1 // pred_region
      %151 = dma.done [#allocation4], 16
    $region41: #{tpu_custom_call.1} parent=1 // pred_fallthru
      _
    // Predicated region
    $region42: #{tpu_custom_call.1} parent=1 // pred_check
      _
    $region43: #{tpu_custom_call.1} parent=1 // pred_check_branch
      %153 = sbr.rel (0) target = $region45
    $region44: #{tpu_custom_call.1} parent=1 // pred_region
      %154 = dma.done [#allocation10], 16
    $region45: #{tpu_custom_call.1} parent=1 // pred_fallthru
      _
    %155 = vsyncpa [#allocation3], 1
    %156 = vsyncpa [#allocation6], 1
    %157 = vsyncpa [#allocation4], 1
    %158 = vsyncpa [#allocation10], 1

</llo_original>
